<compile_context>
chip_gen: v5e
topology: v5e:2x2
jax: 0.10.0
libtpu: 0.0.40
codegen_flags: <defaults>
</compile_context>

<pallas_src>
import math
import jax
import jax.numpy as jnp
from jax.experimental import pallas as pl
from jax.experimental.pallas import tpu as pltpu

# ---- model config (small, consistent with the module) ----
B = 2          # batch
T = 8          # sequence length
N_EMBD = 32    # n_embd
N_HEAD = 4     # n_head
HEAD_DIM = N_EMBD // N_HEAD
LN_EPS = 1e-5


def _layernorm(x, w, b, eps=LN_EPS):
    mu = jnp.mean(x, axis=-1, keepdims=True)
    var = jnp.mean((x - mu) ** 2, axis=-1, keepdims=True)
    xhat = (x - mu) * jax.lax.rsqrt(var + eps)
    return xhat * w + b


def _gelu_exact(x):
    # nn.GELU() default = exact erf formulation
    return 0.5 * x * (1.0 + jax.lax.erf(x / math.sqrt(2.0)))


def block_kernel(x_ref, w_ref, wfc_ref, bfc_ref, bias_ref, hmask_ref, smask_ref,
                 o_ref):
    C, H, Dh = N_EMBD, N_HEAD, HEAD_DIM
    BT = x_ref.shape[0]                                   # B * T rows

    x = x_ref[...]                                        # (BT, C) f32

    # ---- sublane-aligned weight slices (row cuts at multiples of 8 -> no rotates)
    w_q   = w_ref[pl.ds(0 * C, C), :]                     # (C, C)
    w_k   = w_ref[pl.ds(1 * C, C), :]
    w_v   = w_ref[pl.ds(2 * C, C), :]
    w_apj = w_ref[pl.ds(3 * C, C), :]                     # attn output proj
    w_mpj = w_ref[pl.ds(4 * C, 4 * C), :]                 # (4C, C) MLP output proj

    # ---- sublane-packed bias / LayerNorm params, one (1, C) row each
    ln1_w = bias_ref[pl.ds(0, 1), :]
    ln1_b = bias_ref[pl.ds(1, 1), :]
    b_q   = bias_ref[pl.ds(2, 1), :]
    b_k   = bias_ref[pl.ds(3, 1), :]
    b_v   = bias_ref[pl.ds(4, 1), :]
    b_apj = bias_ref[pl.ds(5, 1), :]
    ln2_w = bias_ref[pl.ds(6, 1), :]
    ln2_b = bias_ref[pl.ds(7, 1), :]
    b_mpj = bias_ref[pl.ds(8, 1), :]

    head_mask = hmask_ref[...]                            # (H*BT, C)  0/1
    score_bias = smask_ref[...]                           # (H*BT, H*BT) 0 / -1e30

    # ---- attention branch: x + attn(ln_1(x)) ----
    h = _layernorm(x, ln1_w, ln1_b)                       # (BT, C)
    q = jnp.dot(h, w_q, preferred_element_type=jnp.float32) + b_q
    k = jnp.dot(h, w_k, preferred_element_type=jnp.float32) + b_k
    v = jnp.dot(h, w_v, preferred_element_type=jnp.float32) + b_v

    # Stack heads on the sublane axis: row block hh holds the per-head problem.
    # K'/V' keep only head hh's columns (head_mask); Q' can stay unmasked because
    # cross-head score blocks are killed by the additive -1e30 mask anyway.
    qs = jnp.concatenate([q] * H, axis=0)                 # (H*BT, C)
    ks = jnp.concatenate([k] * H, axis=0) * head_mask     # (H*BT, C)
    vs = jnp.concatenate([v] * H, axis=0) * head_mask     # (H*BT, C)

    scale = 1.0 / math.sqrt(Dh)
    # scores = Q' @ K'^T  (contraction on last dims); same-(head,batch) blocks only
    s = jax.lax.dot_general(qs, ks, (((1,), (1,)), ((), ())),
                            preferred_element_type=jnp.float32)    # (H*BT, H*BT)
    s = s * scale + score_bias
    s = s - jnp.max(s, axis=-1, keepdims=True)
    p = jnp.exp(s)                                        # unnormalized probs
    denom = jnp.sum(p, axis=-1, keepdims=True)            # (H*BT, 1), >= 1
    o_heads = jnp.dot(p, vs, preferred_element_type=jnp.float32)   # (H*BT, C)
    # normalize after the PV matmul (fewer multiplies); approx recip -> EUP slot
    o_heads = o_heads * pl.reciprocal(denom, approx=True)

    # Fold the head row-blocks back together: per-row block hh has only head hh's
    # columns non-zero, so summing blocks == the concatenated multi-head output.
    o = o_heads[0 * BT:1 * BT, :]
    for hh in range(1, H):
        o = o + o_heads[hh * BT:(hh + 1) * BT, :]         # (BT, C)

    y = jnp.dot(o, w_apj, preferred_element_type=jnp.float32) + b_apj
    x = x + y                                             # dropout_1 = identity (p=0)

    # ---- MLP branch: x + mlp(ln_2(x)) ----
    h2 = _layernorm(x, ln2_w, ln2_b)
    f = jnp.dot(h2, wfc_ref[...], preferred_element_type=jnp.float32) + bfc_ref[...]
    g = _gelu_exact(f)
    m = jnp.dot(g, w_mpj, preferred_element_type=jnp.float32) + b_mpj
    o_ref[...] = (x + m).astype(o_ref.dtype)              # dropout_2 = identity (p=0)


def block_forward(x, w_stack, w_fc, b_fc, bias32, head_mask, score_bias):
    """x: (B, T, C) f32.  Other args come from pack_params / make_masks."""
    Bn, Tn, C = x.shape
    x2 = x.reshape(Bn * Tn, C)                            # fold batch onto sublanes
    vmem = pl.BlockSpec(memory_space=pltpu.MemorySpace.VMEM)
    out = pl.pallas_call(
        block_kernel,
        out_shape=jax.ShapeDtypeStruct((Bn * Tn, C), x.dtype),
        in_specs=[vmem] * 7,
        out_specs=vmem,
    )(x2, w_stack, w_fc, b_fc, bias32, head_mask, score_bias)
    return out.reshape(Bn, Tn, C)


def init_params(key, C=N_EMBD):
    ks = jax.random.split(key, 8)
    std = 0.02
    return {
        "ln1_w": jnp.ones((C,), jnp.float32),
        "ln1_b": jnp.zeros((C,), jnp.float32),
        "w_qkv": std * jax.random.normal(ks[0], (C, 3 * C), jnp.float32),
        "b_qkv": std * jax.random.normal(ks[1], (3 * C,), jnp.float32),
        "w_attn_proj": std * jax.random.normal(ks[2], (C, C), jnp.float32),
        "b_attn_proj": std * jax.random.normal(ks[3], (C,), jnp.float32),
        "ln2_w": jnp.ones((C,), jnp.float32),
        "ln2_b": jnp.zeros((C,), jnp.float32),
        "w_fc": std * jax.random.normal(ks[4], (C, 4 * C), jnp.float32),
        "b_fc": std * jax.random.normal(ks[5], (4 * C,), jnp.float32),
        "w_mlp_proj": std * jax.random.normal(ks[6], (4 * C, C), jnp.float32),
        "b_mlp_proj": std * jax.random.normal(ks[7], (C,), jnp.float32),
    }


def pack_params(p, C=N_EMBD):
    """Host-side packing with sublane-axis stacking (lane-aligned slices in-kernel)."""
    w_q = p["w_qkv"][:, 0 * C:1 * C]
    w_k = p["w_qkv"][:, 1 * C:2 * C]
    w_v = p["w_qkv"][:, 2 * C:3 * C]
    # (8C, C): rows [0:C)=Wq, [C:2C)=Wk, [2C:3C)=Wv, [3C:4C)=Wattn_proj, [4C:8C)=Wmlp_proj
    w_stack = jnp.concatenate(
        [w_q, w_k, w_v, p["w_attn_proj"], p["w_mlp_proj"]], axis=0)
    w_fc = p["w_fc"]                                      # (C, 4C) = (32, 128)
    b_fc = p["b_fc"].reshape(1, 4 * C)                    # (1, 128)
    rows = [p["ln1_w"], p["ln1_b"],
            p["b_qkv"][0 * C:1 * C], p["b_qkv"][1 * C:2 * C], p["b_qkv"][2 * C:3 * C],
            p["b_attn_proj"], p["ln2_w"], p["ln2_b"], p["b_mlp_proj"]]
    bias32 = jnp.zeros((16, C), jnp.float32).at[:len(rows)].set(jnp.stack(rows))
    return w_stack, w_fc, b_fc, bias32


def make_masks(Bn=B, Tn=T, H=N_HEAD, C=N_EMBD, Dh=HEAD_DIM):
    """Constant masks for the head-stacked attention, built once host-side."""
    HBT = H * Bn * Tn
    r = jnp.arange(HBT)
    # head column mask: stacked row block hh keeps only columns of head hh
    head_mask = (r[:, None] // (Bn * Tn) == (jnp.arange(C)[None, :] // Dh))
    head_mask = head_mask.astype(jnp.float32)             # (HBT, C)
    # additive score mask: row/col allowed iff same head AND same batch element
    grp = r // Tn                                         # == head * B + batch
    score_bias = jnp.where(grp[:, None] == grp[None, :], 0.0, -1e30)
    return head_mask, score_bias.astype(jnp.float32)      # (HBT, HBT)


def block_reference(x, p):
    """Pure-JAX reference matching the PyTorch Block forward (eval / p=0 dropout)."""
    C, H, Dh = N_EMBD, N_HEAD, HEAD_DIM
    h = _layernorm(x, p["ln1_w"], p["ln1_b"])
    qkv = h @ p["w_qkv"] + p["b_qkv"]
    q, k, v = qkv[..., :C], qkv[..., C:2 * C], qkv[..., 2 * C:]
    rs = lambda z: z.reshape(x.shape[0], x.shape[1], H, Dh).transpose(0, 2, 1, 3)
    q, k, v = rs(q), rs(k), rs(v)
    s = jnp.einsum("bhtd,bhsd->bhts", q, k) / math.sqrt(Dh)
    a = jax.nn.softmax(s, axis=-1)
    y = jnp.einsum("bhts,bhsd->bhtd", a, v).transpose(0, 2, 1, 3).reshape(x.shape)
    y = y @ p["w_attn_proj"] + p["b_attn_proj"]
    x = x + y
    h2 = _layernorm(x, p["ln2_w"], p["ln2_b"])
    f = _gelu_exact(h2 @ p["w_fc"] + p["b_fc"])
    x = x + (f @ p["w_mlp_proj"] + p["b_mlp_proj"])
    return x


if __name__ == "__main__":
    key = jax.random.PRNGKey(0)
    k_x, k_p = jax.random.split(key)
    x = jax.random.normal(k_x, (B, T, N_EMBD), jnp.float32)
    params = init_params(k_p)
    w_stack, w_fc, b_fc, bias32 = pack_params(params)
    head_mask, score_bias = make_masks()

    out = block_forward(x, w_stack, w_fc, b_fc, bias32, head_mask, score_bias)
    out = jax.block_until_ready(out)

    ref = block_reference(x, params)
    assert out.shape == (B, T, N_EMBD)
    # slightly relaxed vs 1e-4 because the softmax denominator uses the EUP
    # approximate reciprocal (pl.reciprocal(..., approx=True)).
    max_err = float(jnp.max(jnp.abs(out - ref)))
    assert jnp.allclose(out, ref, atol=5e-4, rtol=5e-4), max_err

    print("KERNEL_OK")
</pallas_src>

<mosaic_0001>
module attributes {stable_mosaic.version = 11 : i64} {
  func.func @block_kernel(%arg0: memref<16x32xf32, #tpu.memory_space<vmem>>, %arg1: memref<256x32xf32, #tpu.memory_space<vmem>>, %arg2: memref<32x128xf32, #tpu.memory_space<vmem>>, %arg3: memref<1x128xf32, #tpu.memory_space<vmem>>, %arg4: memref<16x32xf32, #tpu.memory_space<vmem>>, %arg5: memref<64x32xf32, #tpu.memory_space<vmem>>, %arg6: memref<64x64xf32, #tpu.memory_space<vmem>>, %arg7: memref<16x32xf32, #tpu.memory_space<vmem>>) attributes {dimension_semantics = [], scalar_prefetch = 0 : i64, scratch_operands = 0 : i64, tpu.core_type = #tpu.core_type<tc>} {
    %c0 = arith.constant 0 : index
    %c0_0 = arith.constant 0 : index
    %0 = vector.load %arg0[%c0, %c0_0] : memref<16x32xf32, #tpu.memory_space<vmem>>, vector<16x32xf32>
    %c0_1 = arith.constant 0 : index
    %c0_2 = arith.constant 0 : index
    %1 = vector.load %arg1[%c0_1, %c0_2] : memref<256x32xf32, #tpu.memory_space<vmem>>, vector<32x32xf32>
    %c32 = arith.constant 32 : index
    %c0_3 = arith.constant 0 : index
    %2 = vector.load %arg1[%c32, %c0_3] : memref<256x32xf32, #tpu.memory_space<vmem>>, vector<32x32xf32>
    %c64 = arith.constant 64 : index
    %c0_4 = arith.constant 0 : index
    %3 = vector.load %arg1[%c64, %c0_4] : memref<256x32xf32, #tpu.memory_space<vmem>>, vector<32x32xf32>
    %c96 = arith.constant 96 : index
    %c0_5 = arith.constant 0 : index
    %4 = vector.load %arg1[%c96, %c0_5] : memref<256x32xf32, #tpu.memory_space<vmem>>, vector<32x32xf32>
    %c128 = arith.constant 128 : index
    %c0_6 = arith.constant 0 : index
    %5 = vector.load %arg1[%c128, %c0_6] : memref<256x32xf32, #tpu.memory_space<vmem>>, vector<128x32xf32>
    %c0_7 = arith.constant 0 : index
    %c0_8 = arith.constant 0 : index
    %6 = vector.load %arg4[%c0_7, %c0_8] : memref<16x32xf32, #tpu.memory_space<vmem>>, vector<1x32xf32>
    %c1 = arith.constant 1 : index
    %c0_9 = arith.constant 0 : index
    %7 = vector.load %arg4[%c1, %c0_9] : memref<16x32xf32, #tpu.memory_space<vmem>>, vector<1x32xf32>
    %c2 = arith.constant 2 : index
    %c0_10 = arith.constant 0 : index
    %8 = vector.load %arg4[%c2, %c0_10] : memref<16x32xf32, #tpu.memory_space<vmem>>, vector<1x32xf32>
    %c3 = arith.constant 3 : index
    %c0_11 = arith.constant 0 : index
    %9 = vector.load %arg4[%c3, %c0_11] : memref<16x32xf32, #tpu.memory_space<vmem>>, vector<1x32xf32>
    %c4 = arith.constant 4 : index
    %c0_12 = arith.constant 0 : index
    %10 = vector.load %arg4[%c4, %c0_12] : memref<16x32xf32, #tpu.memory_space<vmem>>, vector<1x32xf32>
    %c5 = arith.constant 5 : index
    %c0_13 = arith.constant 0 : index
    %11 = vector.load %arg4[%c5, %c0_13] : memref<16x32xf32, #tpu.memory_space<vmem>>, vector<1x32xf32>
    %c6 = arith.constant 6 : index
    %c0_14 = arith.constant 0 : index
    %12 = vector.load %arg4[%c6, %c0_14] : memref<16x32xf32, #tpu.memory_space<vmem>>, vector<1x32xf32>
    %c7 = arith.constant 7 : index
    %c0_15 = arith.constant 0 : index
    %13 = vector.load %arg4[%c7, %c0_15] : memref<16x32xf32, #tpu.memory_space<vmem>>, vector<1x32xf32>
    %c8 = arith.constant 8 : index
    %c0_16 = arith.constant 0 : index
    %14 = vector.load %arg4[%c8, %c0_16] : memref<16x32xf32, #tpu.memory_space<vmem>>, vector<1x32xf32>
    %c0_17 = arith.constant 0 : index
    %c0_18 = arith.constant 0 : index
    %15 = vector.load %arg5[%c0_17, %c0_18] : memref<64x32xf32, #tpu.memory_space<vmem>>, vector<64x32xf32>
    %c0_19 = arith.constant 0 : index
    %c0_20 = arith.constant 0 : index
    %16 = vector.load %arg6[%c0_19, %c0_20] : memref<64x64xf32, #tpu.memory_space<vmem>>, vector<64x64xf32>
    %cst = arith.constant dense<0.000000e+00> : vector<16xf32>
    %17 = vector.multi_reduction <add>, %0, %cst [1] : vector<16x32xf32> to vector<16xf32>
    %18 = vector.shape_cast %17 : vector<16xf32> to vector<16x1xf32>
    %cst_21 = arith.constant 3.200000e+01 : f32
    %19 = vector.broadcast %cst_21 : f32 to vector<16x1xf32>
    %20 = arith.divf %18, %19 : vector<16x1xf32>
    %21 = vector.broadcast %20 : vector<16x1xf32> to vector<16x32xf32>
    %22 = arith.subf %0, %21 : vector<16x32xf32>
    %23 = arith.mulf %22, %22 : vector<16x32xf32>
    %cst_22 = arith.constant dense<0.000000e+00> : vector<16xf32>
    %24 = vector.multi_reduction <add>, %23, %cst_22 [1] : vector<16x32xf32> to vector<16xf32>
    %25 = vector.shape_cast %24 : vector<16xf32> to vector<16x1xf32>
    %cst_23 = arith.constant 3.200000e+01 : f32
    %26 = vector.broadcast %cst_23 : f32 to vector<16x1xf32>
    %27 = arith.divf %25, %26 : vector<16x1xf32>
    %28 = vector.broadcast %20 : vector<16x1xf32> to vector<16x32xf32>
    %29 = arith.subf %0, %28 : vector<16x32xf32>
    %cst_24 = arith.constant 9.99999974E-6 : f32
    %30 = vector.broadcast %cst_24 : f32 to vector<16x1xf32>
    %31 = arith.addf %27, %30 : vector<16x1xf32>
    %32 = math.rsqrt %31 : vector<16x1xf32>
    %33 = vector.broadcast %32 : vector<16x1xf32> to vector<16x32xf32>
    %34 = arith.mulf %29, %33 : vector<16x32xf32>
    %35 = vector.broadcast %6 : vector<1x32xf32> to vector<16x32xf32>
    %36 = arith.mulf %34, %35 : vector<16x32xf32>
    %37 = vector.broadcast %7 : vector<1x32xf32> to vector<16x32xf32>
    %38 = arith.addf %36, %37 : vector<16x32xf32>
    %cst_25 = arith.constant dense<0.000000e+00> : vector<16x32xf32>
    %39 = tpu.matmul %38, %1, %cst_25 {dimension_numbers = #tpu.dot_dimension_numbers<[1], [0], [0], [1], [0, 0, 1, 1], [], []>} : vector<16x32xf32>, vector<32x32xf32>, vector<16x32xf32> -> vector<16x32xf32>
    %40 = vector.broadcast %8 : vector<1x32xf32> to vector<16x32xf32>
    %41 = arith.addf %39, %40 : vector<16x32xf32>
    %cst_26 = arith.constant dense<0.000000e+00> : vector<16x32xf32>
    %42 = tpu.matmul %38, %2, %cst_26 {dimension_numbers = #tpu.dot_dimension_numbers<[1], [0], [0], [1], [0, 0, 1, 1], [], []>} : vector<16x32xf32>, vector<32x32xf32>, vector<16x32xf32> -> vector<16x32xf32>
    %43 = vector.broadcast %9 : vector<1x32xf32> to vector<16x32xf32>
    %44 = arith.addf %42, %43 : vector<16x32xf32>
    %cst_27 = arith.constant dense<0.000000e+00> : vector<16x32xf32>
    %45 = tpu.matmul %38, %3, %cst_27 {dimension_numbers = #tpu.dot_dimension_numbers<[1], [0], [0], [1], [0, 0, 1, 1], [], []>} : vector<16x32xf32>, vector<32x32xf32>, vector<16x32xf32> -> vector<16x32xf32>
    %46 = vector.broadcast %10 : vector<1x32xf32> to vector<16x32xf32>
    %47 = arith.addf %45, %46 : vector<16x32xf32>
    %48 = tpu.concatenate %41, %41, %41, %41 in 0 : vector<16x32xf32>, vector<16x32xf32>, vector<16x32xf32>, vector<16x32xf32> -> vector<64x32xf32>
    %49 = tpu.concatenate %44, %44, %44, %44 in 0 : vector<16x32xf32>, vector<16x32xf32>, vector<16x32xf32>, vector<16x32xf32> -> vector<64x32xf32>
    %50 = arith.mulf %49, %15 : vector<64x32xf32>
    %51 = tpu.concatenate %47, %47, %47, %47 in 0 : vector<16x32xf32>, vector<16x32xf32>, vector<16x32xf32>, vector<16x32xf32> -> vector<64x32xf32>
    %52 = arith.mulf %51, %15 : vector<64x32xf32>
    %cst_28 = arith.constant dense<0.000000e+00> : vector<64x64xf32>
    %53 = tpu.matmul %48, %50, %cst_28 {dimension_numbers = #tpu.dot_dimension_numbers<[1], [1], [0], [0], [0, 0, 1, 0], [], []>} : vector<64x32xf32>, vector<64x32xf32>, vector<64x64xf32> -> vector<64x64xf32>
    %cst_29 = arith.constant 0.353553385 : f32
    %54 = vector.broadcast %cst_29 : f32 to vector<64x64xf32>
    %55 = arith.mulf %53, %54 : vector<64x64xf32>
    %56 = arith.addf %55, %16 : vector<64x64xf32>
    %cst_30 = arith.constant dense<0xFF800000> : vector<64xf32>
    %57 = vector.multi_reduction <maximumf>, %56, %cst_30 [1] : vector<64x64xf32> to vector<64xf32>
    %58 = vector.shape_cast %57 : vector<64xf32> to vector<64x1xf32>
    %59 = vector.broadcast %58 : vector<64x1xf32> to vector<64x64xf32>
    %60 = arith.subf %56, %59 : vector<64x64xf32>
    %61 = math.exp %60 : vector<64x64xf32>
    %cst_31 = arith.constant dense<0.000000e+00> : vector<64xf32>
    %62 = vector.multi_reduction <add>, %61, %cst_31 [1] : vector<64x64xf32> to vector<64xf32>
    %63 = vector.shape_cast %62 : vector<64xf32> to vector<64x1xf32>
    %cst_32 = arith.constant dense<0.000000e+00> : vector<64x32xf32>
    %64 = tpu.matmul %61, %52, %cst_32 {dimension_numbers = #tpu.dot_dimension_numbers<[1], [0], [0], [1], [0, 0, 1, 1], [], []>} : vector<64x64xf32>, vector<64x32xf32>, vector<64x32xf32> -> vector<64x32xf32>
    %65 = tpu.reciprocal %63 {approx = true} : vector<64x1xf32> -> vector<64x1xf32>
    %66 = vector.broadcast %65 : vector<64x1xf32> to vector<64x32xf32>
    %67 = arith.mulf %64, %66 : vector<64x32xf32>
    %68 = vector.extract_strided_slice %67 {offsets = [0, 0], sizes = [16, 32], strides = [1, 1]} : vector<64x32xf32> to vector<16x32xf32>
    %69 = vector.extract_strided_slice %67 {offsets = [16, 0], sizes = [16, 32], strides = [1, 1]} : vector<64x32xf32> to vector<16x32xf32>
    %70 = arith.addf %68, %69 : vector<16x32xf32>
    %71 = vector.extract_strided_slice %67 {offsets = [32, 0], sizes = [16, 32], strides = [1, 1]} : vector<64x32xf32> to vector<16x32xf32>
    %72 = arith.addf %70, %71 : vector<16x32xf32>
    %73 = vector.extract_strided_slice %67 {offsets = [48, 0], sizes = [16, 32], strides = [1, 1]} : vector<64x32xf32> to vector<16x32xf32>
    %74 = arith.addf %72, %73 : vector<16x32xf32>
    %cst_33 = arith.constant dense<0.000000e+00> : vector<16x32xf32>
    %75 = tpu.matmul %74, %4, %cst_33 {dimension_numbers = #tpu.dot_dimension_numbers<[1], [0], [0], [1], [0, 0, 1, 1], [], []>} : vector<16x32xf32>, vector<32x32xf32>, vector<16x32xf32> -> vector<16x32xf32>
    %76 = vector.broadcast %11 : vector<1x32xf32> to vector<16x32xf32>
    %77 = arith.addf %75, %76 : vector<16x32xf32>
    %78 = arith.addf %0, %77 : vector<16x32xf32>
    %cst_34 = arith.constant dense<0.000000e+00> : vector<16xf32>
    %79 = vector.multi_reduction <add>, %78, %cst_34 [1] : vector<16x32xf32> to vector<16xf32>
    %80 = vector.shape_cast %79 : vector<16xf32> to vector<16x1xf32>
    %cst_35 = arith.constant 3.200000e+01 : f32
    %81 = vector.broadcast %cst_35 : f32 to vector<16x1xf32>
    %82 = arith.divf %80, %81 : vector<16x1xf32>
    %83 = vector.broadcast %82 : vector<16x1xf32> to vector<16x32xf32>
    %84 = arith.subf %78, %83 : vector<16x32xf32>
    %85 = arith.mulf %84, %84 : vector<16x32xf32>
    %cst_36 = arith.constant dense<0.000000e+00> : vector<16xf32>
    %86 = vector.multi_reduction <add>, %85, %cst_36 [1] : vector<16x32xf32> to vector<16xf32>
    %87 = vector.shape_cast %86 : vector<16xf32> to vector<16x1xf32>
    %cst_37 = arith.constant 3.200000e+01 : f32
    %88 = vector.broadcast %cst_37 : f32 to vector<16x1xf32>
    %89 = arith.divf %87, %88 : vector<16x1xf32>
    %90 = vector.broadcast %82 : vector<16x1xf32> to vector<16x32xf32>
    %91 = arith.subf %78, %90 : vector<16x32xf32>
    %cst_38 = arith.constant 9.99999974E-6 : f32
    %92 = vector.broadcast %cst_38 : f32 to vector<16x1xf32>
    %93 = arith.addf %89, %92 : vector<16x1xf32>
    %94 = math.rsqrt %93 : vector<16x1xf32>
    %95 = vector.broadcast %94 : vector<16x1xf32> to vector<16x32xf32>
    %96 = arith.mulf %91, %95 : vector<16x32xf32>
    %97 = vector.broadcast %12 : vector<1x32xf32> to vector<16x32xf32>
    %98 = arith.mulf %96, %97 : vector<16x32xf32>
    %99 = vector.broadcast %13 : vector<1x32xf32> to vector<16x32xf32>
    %100 = arith.addf %98, %99 : vector<16x32xf32>
    %c0_39 = arith.constant 0 : index
    %c0_40 = arith.constant 0 : index
    %101 = vector.load %arg2[%c0_39, %c0_40] : memref<32x128xf32, #tpu.memory_space<vmem>>, vector<32x128xf32>
    %cst_41 = arith.constant dense<0.000000e+00> : vector<16x128xf32>
    %102 = tpu.matmul %100, %101, %cst_41 {dimension_numbers = #tpu.dot_dimension_numbers<[1], [0], [0], [1], [0, 0, 1, 1], [], []>} : vector<16x32xf32>, vector<32x128xf32>, vector<16x128xf32> -> vector<16x128xf32>
    %c0_42 = arith.constant 0 : index
    %c0_43 = arith.constant 0 : index
    %103 = vector.load %arg3[%c0_42, %c0_43] : memref<1x128xf32, #tpu.memory_space<vmem>>, vector<1x128xf32>
    %104 = vector.broadcast %103 : vector<1x128xf32> to vector<16x128xf32>
    %105 = arith.addf %102, %104 : vector<16x128xf32>
    %cst_44 = arith.constant 5.000000e-01 : f32
    %106 = vector.broadcast %cst_44 : f32 to vector<16x128xf32>
    %107 = arith.mulf %106, %105 : vector<16x128xf32>
    %cst_45 = arith.constant 1.41421354 : f32
    %108 = vector.broadcast %cst_45 : f32 to vector<16x128xf32>
    %109 = arith.divf %105, %108 : vector<16x128xf32>
    %110 = math.erf %109 : vector<16x128xf32>
    %cst_46 = arith.constant 1.000000e+00 : f32
    %111 = vector.broadcast %cst_46 : f32 to vector<16x128xf32>
    %112 = arith.addf %111, %110 : vector<16x128xf32>
    %113 = arith.mulf %107, %112 : vector<16x128xf32>
    %cst_47 = arith.constant dense<0.000000e+00> : vector<16x32xf32>
    %114 = tpu.matmul %113, %5, %cst_47 {dimension_numbers = #tpu.dot_dimension_numbers<[1], [0], [0], [1], [0, 0, 1, 1], [], []>} : vector<16x128xf32>, vector<128x32xf32>, vector<16x32xf32> -> vector<16x32xf32>
    %115 = vector.broadcast %14 : vector<1x32xf32> to vector<16x32xf32>
    %116 = arith.addf %114, %115 : vector<16x32xf32>
    %117 = arith.addf %78, %116 : vector<16x32xf32>
    %c0_48 = arith.constant 0 : index
    %c0_49 = arith.constant 0 : index
    %118 = vector.load %arg7[%c0_48, %c0_49] : memref<16x32xf32, #tpu.memory_space<vmem>>, vector<16x32xf32>
    tpu.vector_store %arg7[%c0_48, %c0_49], %117 {strides = array<i32>} : memref<16x32xf32, #tpu.memory_space<vmem>>, vector<16x32xf32>,
    return
  }
}

</mosaic_0001>

<llo_original>
// kernel: tpu_custom_call.1
$region0: #{tpu_custom_call.1}
  #allocation0 [shape = 'u32[]', space=smem, size = 0x4, offset = 0x4, fixed_abs, tag = 'smem constant byte address 0x4 - core index']
  #allocation1 [shape = 'u32[72,128]{1,0:T(1,128)}', space=vmem, size = 0x9000, scoped, tag = 'internal scratch']
  %s0 = inlined_call_operand.vmem [shape: f32[16,32], index: 0, kind: input, shape index: {}]
  %s1 = inlined_call_operand.vmem [shape: f32[256,32], index: 1, kind: input, shape index: {}]
  %s2 = inlined_call_operand.vmem [shape: f32[32,128], index: 2, kind: input, shape index: {}]
  %s3 = inlined_call_operand.vmem [shape: f32[1,128], index: 3, kind: input, shape index: {}]
  %s4 = inlined_call_operand.vmem [shape: f32[16,32], index: 4, kind: input, shape index: {}]
  %s5 = inlined_call_operand.vmem [shape: f32[64,32], index: 5, kind: input, shape index: {}]
  %s6 = inlined_call_operand.vmem [shape: f32[64,64], index: 6, kind: input, shape index: {}]
  %s7 = inlined_call_operand.hbm [shape: f32[16,32], index: 7, kind: output, shape index: {}]
  %s8 = sld [smem:[#allocation0]]
  $region38: #{tpu_custom_call.1} parent=0
    _
  %s10 = ssub.s32 1, %s8
  %s11 = scalar_select 0, %s10, %s8
  $region1: #{tpu_custom_call.1} parent=0
    #allocation2 [shape = 'u8[8192]{0}', space=vmem, size = 0x2000, scoped, tag = 'output window, operand 0, single buffered']
    #allocation3 [shape = 's32[1]{0}', space=sflag, size = 0x4, scoped, tag = 'scoped memory for tpu_custom_call.1']
    %12 = vsyncpa [#allocation3], 0
    // Predicated region
    $region2: #{tpu_custom_call.1} parent=1 // pred_check
      _
    $region3: #{tpu_custom_call.1} parent=1 // pred_check_branch
      %14 = sbr.rel (0) target = $region5
    $region4: #{tpu_custom_call.1} parent=1 // pred_region
      _
    $region5: #{tpu_custom_call.1} parent=1 // pred_fallthru
      _
    // Predicated region
    $region6: #{tpu_custom_call.1} parent=1 // pred_check
      _
    $region7: #{tpu_custom_call.1} parent=1 // pred_check_branch
      %16 = sbr.rel (0) target = $region9
    $region8: #{tpu_custom_call.1} parent=1 // pred_region
      _
    $region9: #{tpu_custom_call.1} parent=1 // pred_fallthru
      _
    // Predicated region
    $region10: #{tpu_custom_call.1} parent=1 // pred_check
      _
    $region11: #{tpu_custom_call.1} parent=1 // pred_check_branch
      %18 = sbr.rel (0) target = $region13
    $region12: #{tpu_custom_call.1} parent=1 // pred_region
      _
    $region13: #{tpu_custom_call.1} parent=1 // pred_fallthru
      _
    // Predicated region
    $region14: #{tpu_custom_call.1} parent=1 // pred_check
      _
    $region15: #{tpu_custom_call.1} parent=1 // pred_check_branch
      %20 = sbr.rel (0) target = $region17
    $region16: #{tpu_custom_call.1} parent=1 // pred_region
      _
    $region17: #{tpu_custom_call.1} parent=1 // pred_fallthru
      _
    // Predicated region
    $region18: #{tpu_custom_call.1} parent=1 // pred_check
      _
    $region19: #{tpu_custom_call.1} parent=1 // pred_check_branch
      %22 = sbr.rel (0) target = $region21
    $region20: #{tpu_custom_call.1} parent=1 // pred_region
      _
    $region21: #{tpu_custom_call.1} parent=1 // pred_fallthru
      _
    // Predicated region
    $region22: #{tpu_custom_call.1} parent=1 // pred_check
      _
    $region23: #{tpu_custom_call.1} parent=1 // pred_check_branch
      %24 = sbr.rel (0) target = $region25
    $region24: #{tpu_custom_call.1} parent=1 // pred_region
      _
    $region25: #{tpu_custom_call.1} parent=1 // pred_fallthru
      _
    // Predicated region
    $region26: #{tpu_custom_call.1} parent=1 // pred_check
      _
    $region27: #{tpu_custom_call.1} parent=1 // pred_check_branch
      %26 = sbr.rel (0) target = $region29
    $region28: #{tpu_custom_call.1} parent=1 // pred_region
      _
    $region29: #{tpu_custom_call.1} parent=1 // pred_fallthru
      _
    %v27 = vld [vmem:[%s0] sm:$0xff]
    %v28 = vld [vmem:[%s0 + $0x8] sm:$0xff]
    %v29 = vld [vmem:[%s1] sm:$0xff]
    %v30 = vld [vmem:[%s1 + $0x8] sm:$0xff]
    %v31 = vld [vmem:[%s1 + $0x10] sm:$0xff]
    %v32 = vld [vmem:[%s1 + $0x18] sm:$0xff]
    %v33 = vld [vmem:[%s1 + $0x20] sm:$0xff]
    %v34 = vld [vmem:[%s1 + $0x28] sm:$0xff]
    %v35 = vld [vmem:[%s1 + $0x30] sm:$0xff]
    %v36 = vld [vmem:[%s1 + $0x38] sm:$0xff]
    %v37 = vld [vmem:[%s1 + $0x40] sm:$0xff]
    %v38 = vld [vmem:[%s1 + $0x48] sm:$0xff]
    %v39 = vld [vmem:[%s1 + $0x50] sm:$0xff]
    %v40 = vld [vmem:[%s1 + $0x58] sm:$0xff]
    %v41 = vld [vmem:[%s1 + $0x60] sm:$0xff]
    %v42 = vld [vmem:[%s1 + $0x68] sm:$0xff]
    %v43 = vld [vmem:[%s1 + $0x70] sm:$0xff]
    %v44 = vld [vmem:[%s1 + $0x78] sm:$0xff]
    %v45 = vld [vmem:[%s1 + $0x80] sm:$0xff]
    %v46 = vld [vmem:[%s1 + $0x88] sm:$0xff]
    %v47 = vld [vmem:[%s1 + $0x90] sm:$0xff]
    %v48 = vld [vmem:[%s1 + $0x98] sm:$0xff]
    %v49 = vld [vmem:[%s1 + $0xa0] sm:$0xff]
    %v50 = vld [vmem:[%s1 + $0xa8] sm:$0xff]
    %v51 = vld [vmem:[%s1 + $0xb0] sm:$0xff]
    %v52 = vld [vmem:[%s1 + $0xb8] sm:$0xff]
    %v53 = vld [vmem:[%s1 + $0xc0] sm:$0xff]
    %v54 = vld [vmem:[%s1 + $0xc8] sm:$0xff]
    %v55 = vld [vmem:[%s1 + $0xd0] sm:$0xff]
    %v56 = vld [vmem:[%s1 + $0xd8] sm:$0xff]
    %v57 = vld [vmem:[%s1 + $0xe0] sm:$0xff]
    %v58 = vld [vmem:[%s1 + $0xe8] sm:$0xff]
    %v59 = vld [vmem:[%s1 + $0xf0] sm:$0xff]
    %v60 = vld [vmem:[%s1 + $0xf8] sm:$0xff]
    %v61 = vld [vmem:[%s4] sm:$0x1]
    %v62 = vld [vmem:[%s4 + $0x1] sm:$0x1]
    %v63 = vld [vmem:[%s4 + $0x2] sm:$0x1]
    %v64 = vld [vmem:[%s4 + $0x3] sm:$0x1]
    %v65 = vld [vmem:[%s4 + $0x4] sm:$0x1]
    %v66 = vld [vmem:[%s4 + $0x5] sm:$0x1]
    %v67 = vld [vmem:[%s4 + $0x6] sm:$0x1]
    %v68 = vld [vmem:[%s4 + $0x7] sm:$0x1]
    %v69 = vld [vmem:[%s4 + $0x8] sm:$0x1]
    %v70 = vld [vmem:[%s5] sm:$0xff]
    %v71 = vld [vmem:[%s5 + $0x8] sm:$0xff]
    %v72 = vld [vmem:[%s5 + $0x10] sm:$0xff]
    %v73 = vld [vmem:[%s5 + $0x18] sm:$0xff]
    %v74 = vld [vmem:[%s5 + $0x20] sm:$0xff]
    %v75 = vld [vmem:[%s5 + $0x28] sm:$0xff]
    %v76 = vld [vmem:[%s5 + $0x30] sm:$0xff]
    %v77 = vld [vmem:[%s5 + $0x38] sm:$0xff]
    %v78 = vld [vmem:[%s6] sm:$0xff]
    %v79 = vld [vmem:[%s6 + $0x8] sm:$0xff]
    %v80 = vld [vmem:[%s6 + $0x10] sm:$0xff]
    %v81 = vld [vmem:[%s6 + $0x18] sm:$0xff]
    %v82 = vld [vmem:[%s6 + $0x20] sm:$0xff]
    %v83 = vld [vmem:[%s6 + $0x28] sm:$0xff]
    %v84 = vld [vmem:[%s6 + $0x30] sm:$0xff]
    %v85 = vld [vmem:[%s6 + $0x38] sm:$0xff]
    %vm86 = vcmask 261120
    %v87 = vsel %vm86, %v27, 0.0
    %88 = vadd.xlane.f32.xlu0 %v87
    %v89 = vpop.xlane.xlu0 %88
    %v90 = vsel %vm86, %v28, 0.0
    %91 = vadd.xlane.f32.xlu0 %v90
    %v92 = vpop.xlane.xlu0 %91
    %v93 = vrcp.pop 32.0
    %v94 = vmul.f32 32.0, %v93
    %v95 = vsub.f32 1.0, %v94
    %v96 = vmul.f32 %v93, %v95
    %v97 = vadd.f32 %v93, %v96
    %vm98 = vweird.f32 %v93
    %v99 = vsel %vm98, %v93, %v97
    %v100 = vmul.f32 %v89, %v99
    %v101 = vmul.f32 %v92, %v99
    %v102 = vsub.f32 %v27, %v100
    %v103 = vsub.f32 %v28, %v101
    %v104 = vmul.f32 %v102, %v102
    %v105 = vmul.f32 %v103, %v103
    %v106 = vsel %vm86, %v104, 0.0
    %107 = vadd.xlane.f32.xlu0 %v106
    %v108 = vpop.xlane.xlu0 %107
    %v109 = vsel %vm86, %v105, 0.0
    %110 = vadd.xlane.f32.xlu0 %v109
    %v111 = vpop.xlane.xlu0 %110
    %v112 = vmul.f32 %v108, %v99
    %v113 = vmul.f32 %v111, %v99
    %v114 = vadd.f32 %v112, 1e-05
    %v115 = vadd.f32 %v113, 1e-05
    %v116 = vrsqrt.pop %v114
    %v117 = vmul.f32 %v116, %v114
    %v118 = vmul.f32 %v117, %v116
    %v119 = vmul.f32 0.5, %v118
    %v120 = vsub.f32 1.5, %v119
    %v121 = vmul.f32 %v116, %v120
    %vm122 = vweird.f32 %v114
    %vm123 = vweird.f32 %v116
    %vm124 = vmor %vm122, %vm123
    %v125 = vsel %vm124, %v116, %v121
    %v126 = vrsqrt.pop %v115
    %v127 = vmul.f32 %v126, %v115
    %v128 = vmul.f32 %v127, %v126
    %v129 = vmul.f32 0.5, %v128
    %v130 = vsub.f32 1.5, %v129
    %v131 = vmul.f32 %v126, %v130
    %vm132 = vweird.f32 %v115
    %vm133 = vweird.f32 %v126
    %vm134 = vmor %vm132, %vm133
    %v135 = vsel %vm134, %v126, %v131
    %v136 = vmul.f32 %v102, %v125
    %v137 = vmul.f32 %v103, %v135
    %v138 = vperm.slane %v61, 0
    %v139 = vmul.f32 %v136, %v138
    %v140 = vmul.f32 %v137, %v138
    %v141 = vperm.slane %v62, 0
    %v142 = vadd.f32 %v139, %v141
    %v143 = vadd.f32 %v140, %v141
    %v144 = vperm.slane %v63, 0
    %v146 = vsel %vm86, %v142, 0
    %v149 = vsel %vm86, %v143, 0
    %151 = vmatpush.msra.mxu0 0.0
    %152 = vmatpush.msra.mxu0 0.0
    %153 = vmatpush.msra.mxu0 0.0
    %154 = vmatpush.msra.mxu0 0.0
    %155 = vmatpush.msra.mxu0 0.0
    %156 = vmatpush.msra.mxu0 0.0
    %157 = vmatpush.msra.mxu0 0.0
    %158 = vmatpush.msra.mxu0 0.0
    %159 = vmatpush.msra.mxu0 0.0
    %160 = vmatpush.msra.mxu0 0.0
    %161 = vmatpush.msra.mxu0 0.0
    %162 = vmatpush.msra.mxu0 0.0
    %163 = vmatpush.msra.mxu0 %v32
    %164 = vmatpush.msra.mxu0 %v31
    %165 = vmatpush.msra.mxu0 %v30
    %166 = vmatpush.msra.mxu0 %v29
    %167 = vmatmul.f32.gmra.mxu0 %v146
    %v168 = vpop.f32.mrf.mxu0
    %v169 = vadd.f32 %v144, %v168
    %170 = vmatmul.f32.gmra.mxu0 %v149
    %v171 = vpop.f32.mrf.mxu0
    %v172 = vadd.f32 %v144, %v171
    %173 = vdwg.mxu0
    %v174 = vperm.slane %v64, 0
    %175 = vmatpush.msra.mxu0 0.0
    %176 = vmatpush.msra.mxu0 0.0
    %177 = vmatpush.msra.mxu0 0.0
    %178 = vmatpush.msra.mxu0 0.0
    %179 = vmatpush.msra.mxu0 0.0
    %180 = vmatpush.msra.mxu0 0.0
    %181 = vmatpush.msra.mxu0 0.0
    %182 = vmatpush.msra.mxu0 0.0
    %183 = vmatpush.msra.mxu0 0.0
    %184 = vmatpush.msra.mxu0 0.0
    %185 = vmatpush.msra.mxu0 0.0
    %186 = vmatpush.msra.mxu0 0.0
    %187 = vmatpush.msra.mxu0 %v36
    %188 = vmatpush.msra.mxu0 %v35
    %189 = vmatpush.msra.mxu0 %v34
    %190 = vmatpush.msra.mxu0 %v33
    %191 = vmatmul.f32.gmra.mxu0 %v146
    %v192 = vpop.f32.mrf.mxu0
    %v193 = vadd.f32 %v174, %v192
    %194 = vmatmul.f32.gmra.mxu0 %v149
    %v195 = vpop.f32.mrf.mxu0
    %v196 = vadd.f32 %v174, %v195
    %197 = vdwg.mxu0
    %v198 = vperm.slane %v65, 0
    %199 = vmatpush.msra.mxu0 0.0
    %200 = vmatpush.msra.mxu0 0.0
    %201 = vmatpush.msra.mxu0 0.0
    %202 = vmatpush.msra.mxu0 0.0
    %203 = vmatpush.msra.mxu0 0.0
    %204 = vmatpush.msra.mxu0 0.0
    %205 = vmatpush.msra.mxu0 0.0
    %206 = vmatpush.msra.mxu0 0.0
    %207 = vmatpush.msra.mxu0 0.0
    %208 = vmatpush.msra.mxu0 0.0
    %209 = vmatpush.msra.mxu0 0.0
    %210 = vmatpush.msra.mxu0 0.0
    %211 = vmatpush.msra.mxu0 %v40
    %212 = vmatpush.msra.mxu0 %v39
    %213 = vmatpush.msra.mxu0 %v38
    %214 = vmatpush.msra.mxu0 %v37
    %215 = vmatmul.f32.gmra.mxu0 %v146
    %v216 = vpop.f32.mrf.mxu0
    %v217 = vadd.f32 %v198, %v216
    %218 = vmatmul.f32.gmra.mxu0 %v149
    %v219 = vpop.f32.mrf.mxu0
    %v220 = vadd.f32 %v198, %v219
    %221 = vdwg.mxu0
    %v222 = vmul.f32 %v193, %v70
    %v223 = vmul.f32 %v196, %v71
    %v224 = vmul.f32 %v193, %v72
    %v225 = vmul.f32 %v196, %v73
    %v226 = vmul.f32 %v193, %v74
    %v227 = vmul.f32 %v196, %v75
    %v228 = vmul.f32 %v193, %v76
    %v229 = vmul.f32 %v196, %v77
    %v230 = vmul.f32 %v217, %v70
    %v231 = vmul.f32 %v220, %v71
    %v232 = vmul.f32 %v217, %v72
    %v233 = vmul.f32 %v220, %v73
    %v234 = vmul.f32 %v217, %v74
    %v235 = vmul.f32 %v220, %v75
    %v236 = vmul.f32 %v217, %v76
    %v237 = vmul.f32 %v220, %v77
    %v239 = vsel %vm86, %v169, 0
    %v242 = vsel %vm86, %v172, 0
    %v245 = vsel %vm86, %v222, 0
    %v248 = vsel %vm86, %v223, 0
    %v251 = vsel %vm86, %v224, 0
    %v254 = vsel %vm86, %v225, 0
    %v257 = vsel %vm86, %v226, 0
    %v260 = vsel %vm86, %v227, 0
    %v263 = vsel %vm86, %v228, 0
    %v266 = vsel %vm86, %v229, 0
    %268 = vmatpush.xpose.msra.mxu0 0.0
    %269 = vmatpush.xpose.msra.mxu0 0.0
    %270 = vmatpush.xpose.msra.mxu0 0.0
    %271 = vmatpush.xpose.msra.mxu0 0.0
    %272 = vmatpush.xpose.msra.mxu0 0.0
    %273 = vmatpush.xpose.msra.mxu0 0.0
    %274 = vmatpush.xpose.msra.mxu0 0.0
    %275 = vmatpush.xpose.msra.mxu0 0.0
    %276 = vmatpush.xpose.msra.mxu0 %v266
    %277 = vmatpush.xpose.msra.mxu0 %v263
    %278 = vmatpush.xpose.msra.mxu0 %v260
    %279 = vmatpush.xpose.msra.mxu0 %v257
    %280 = vmatpush.xpose.msra.mxu0 %v254
    %281 = vmatpush.xpose.msra.mxu0 %v251
    %282 = vmatpush.xpose.msra.mxu0 %v248
    %283 = vmatpush.xpose.msra.mxu0 %v245
    %284 = vmatmul.f32.gmra.mxu0 %v239
    %v285 = vpop.f32.mrf.mxu0
    %v286 = vadd.f32 0.0, %v285
    %287 = vmatmul.f32.gmra.mxu0 %v242
    %v288 = vpop.f32.mrf.mxu0
    %v289 = vadd.f32 0.0, %v288
    %290 = vmatmul.f32.gmra.mxu0 %v239
    %v291 = vpop.f32.mrf.mxu0
    %v292 = vadd.f32 0.0, %v291
    %293 = vmatmul.f32.gmra.mxu0 %v242
    %v294 = vpop.f32.mrf.mxu0
    %v295 = vadd.f32 0.0, %v294
    %296 = vmatmul.f32.gmra.mxu0 %v239
    %v297 = vpop.f32.mrf.mxu0
    %v298 = vadd.f32 0.0, %v297
    %299 = vmatmul.f32.gmra.mxu0 %v242
    %v300 = vpop.f32.mrf.mxu0
    %v301 = vadd.f32 0.0, %v300
    %302 = vmatmul.f32.gmra.mxu0 %v239
    %v303 = vpop.f32.mrf.mxu0
    %v304 = vadd.f32 0.0, %v303
    %305 = vmatmul.f32.gmra.mxu0 %v242
    %v306 = vpop.f32.mrf.mxu0
    %v307 = vadd.f32 0.0, %v306
    %308 = vdwg.mxu0
    %v309 = vmul.f32 %v286, 0.35355338
    %v310 = vmul.f32 %v289, 0.35355338
    %v311 = vmul.f32 %v292, 0.35355338
    %v312 = vmul.f32 %v295, 0.35355338
    %v313 = vmul.f32 %v298, 0.35355338
    %v314 = vmul.f32 %v301, 0.35355338
    %v315 = vmul.f32 %v304, 0.35355338
    %v316 = vmul.f32 %v307, 0.35355338
    %v317 = vadd.f32 %v309, %v78
    %v318 = vadd.f32 %v310, %v79
    %v319 = vadd.f32 %v311, %v80
    %v320 = vadd.f32 %v312, %v81
    %v321 = vadd.f32 %v313, %v82
    %v322 = vadd.f32 %v314, %v83
    %v323 = vadd.f32 %v315, %v84
    %v324 = vadd.f32 %v316, %v85
    %vm325 = vcmask 523264
    %v326 = vsel %vm325, %v317, -inf
    %327 = vmax.xlane.f32.xlu0 %v326
    %v328 = vpop.xlane.xlu0 %327
    %v329 = vsel %vm325, %v318, -inf
    %330 = vmax.xlane.f32.xlu0 %v329
    %v331 = vpop.xlane.xlu0 %330
    %v332 = vsel %vm325, %v319, -inf
    %333 = vmax.xlane.f32.xlu0 %v332
    %v334 = vpop.xlane.xlu0 %333
    %v335 = vsel %vm325, %v320, -inf
    %336 = vmax.xlane.f32.xlu0 %v335
    %v337 = vpop.xlane.xlu0 %336
    %v338 = vsel %vm325, %v321, -inf
    %339 = vmax.xlane.f32.xlu0 %v338
    %v340 = vpop.xlane.xlu0 %339
    %v341 = vsel %vm325, %v322, -inf
    %342 = vmax.xlane.f32.xlu0 %v341
    %v343 = vpop.xlane.xlu0 %342
    %v344 = vsel %vm325, %v323, -inf
    %345 = vmax.xlane.f32.xlu0 %v344
    %v346 = vpop.xlane.xlu0 %345
    %v347 = vsel %vm325, %v324, -inf
    %348 = vmax.xlane.f32.xlu0 %v347
    %v349 = vpop.xlane.xlu0 %348
    %v350 = vsub.f32 %v317, %v328
    %v351 = vsub.f32 %v318, %v331
    %v352 = vsub.f32 %v319, %v334
    %v353 = vsub.f32 %v320, %v337
    %v354 = vsub.f32 %v321, %v340
    %v355 = vsub.f32 %v322, %v343
    %v356 = vsub.f32 %v323, %v346
    %v357 = vsub.f32 %v324, %v349
    %v358 = vmul.f32 %v350, 1.442695
    %v359 = vpow.pop %v358
    %v360 = vmul.f32 %v351, 1.442695
    %v361 = vpow.pop %v360
    %v362 = vmul.f32 %v352, 1.442695
    %v363 = vpow.pop %v362
    %v364 = vmul.f32 %v353, 1.442695
    %v365 = vpow.pop %v364
    %v366 = vmul.f32 %v354, 1.442695
    %v367 = vpow.pop %v366
    %v368 = vmul.f32 %v355, 1.442695
    %v369 = vpow.pop %v368
    %v370 = vmul.f32 %v356, 1.442695
    %v371 = vpow.pop %v370
    %v372 = vmul.f32 %v357, 1.442695
    %v373 = vpow.pop %v372
    %v374 = vsel %vm325, %v359, 0.0
    %375 = vadd.xlane.f32.xlu0 %v374
    %v376 = vpop.xlane.xlu0 %375
    %v377 = vsel %vm325, %v361, 0.0
    %378 = vadd.xlane.f32.xlu0 %v377
    %v379 = vpop.xlane.xlu0 %378
    %v380 = vsel %vm325, %v363, 0.0
    %381 = vadd.xlane.f32.xlu0 %v380
    %v382 = vpop.xlane.xlu0 %381
    %v383 = vsel %vm325, %v365, 0.0
    %384 = vadd.xlane.f32.xlu0 %v383
    %v385 = vpop.xlane.xlu0 %384
    %v386 = vsel %vm325, %v367, 0.0
    %387 = vadd.xlane.f32.xlu0 %v386
    %v388 = vpop.xlane.xlu0 %387
    %v389 = vsel %vm325, %v369, 0.0
    %390 = vadd.xlane.f32.xlu0 %v389
    %v391 = vpop.xlane.xlu0 %390
    %v392 = vsel %vm325, %v371, 0.0
    %393 = vadd.xlane.f32.xlu0 %v392
    %v394 = vpop.xlane.xlu0 %393
    %v395 = vsel %vm325, %v373, 0.0
    %396 = vadd.xlane.f32.xlu0 %v395
    %v397 = vpop.xlane.xlu0 %396
    %v399 = vsel %vm325, %v359, 0
    %v402 = vsel %vm325, %v361, 0
    %v405 = vsel %vm325, %v363, 0
    %v408 = vsel %vm325, %v365, 0
    %v411 = vsel %vm325, %v367, 0
    %v414 = vsel %vm325, %v369, 0
    %v417 = vsel %vm325, %v371, 0
    %v420 = vsel %vm325, %v373, 0
    %422 = vmatpush.msra.mxu0 0.0
    %423 = vmatpush.msra.mxu0 0.0
    %424 = vmatpush.msra.mxu0 0.0
    %425 = vmatpush.msra.mxu0 0.0
    %426 = vmatpush.msra.mxu0 0.0
    %427 = vmatpush.msra.mxu0 0.0
    %428 = vmatpush.msra.mxu0 0.0
    %429 = vmatpush.msra.mxu0 0.0
    %430 = vmatpush.msra.mxu0 %v237
    %431 = vmatpush.msra.mxu0 %v236
    %432 = vmatpush.msra.mxu0 %v235
    %433 = vmatpush.msra.mxu0 %v234
    %434 = vmatpush.msra.mxu0 %v233
    %435 = vmatpush.msra.mxu0 %v232
    %436 = vmatpush.msra.mxu0 %v231
    %437 = vmatpush.msra.mxu0 %v230
    %438 = vmatmul.f32.gmra.mxu0 %v399
    %v439 = vpop.f32.mrf.mxu0
    %v440 = vadd.f32 0.0, %v439
    %441 = vmatmul.f32.gmra.mxu0 %v402
    %v442 = vpop.f32.mrf.mxu0
    %v443 = vadd.f32 0.0, %v442
    %444 = vmatmul.f32.gmra.mxu0 %v405
    %v445 = vpop.f32.mrf.mxu0
    %v446 = vadd.f32 0.0, %v445
    %447 = vmatmul.f32.gmra.mxu0 %v408
    %v448 = vpop.f32.mrf.mxu0
    %v449 = vadd.f32 0.0, %v448
    %450 = vmatmul.f32.gmra.mxu0 %v411
    %v451 = vpop.f32.mrf.mxu0
    %v452 = vadd.f32 0.0, %v451
    %453 = vmatmul.f32.gmra.mxu0 %v414
    %v454 = vpop.f32.mrf.mxu0
    %v455 = vadd.f32 0.0, %v454
    %456 = vmatmul.f32.gmra.mxu0 %v417
    %v457 = vpop.f32.mrf.mxu0
    %v458 = vadd.f32 0.0, %v457
    %459 = vmatmul.f32.gmra.mxu0 %v420
    %v460 = vpop.f32.mrf.mxu0
    %v461 = vadd.f32 0.0, %v460
    %462 = vdwg.mxu0
    %v463 = vrcp.pop %v376
    %v464 = vrcp.pop %v379
    %v465 = vrcp.pop %v382
    %v466 = vrcp.pop %v385
    %v467 = vrcp.pop %v388
    %v468 = vrcp.pop %v391
    %v469 = vrcp.pop %v394
    %v470 = vrcp.pop %v397
    %v471 = vmul.f32 %v440, %v463
    %v472 = vmul.f32 %v443, %v464
    %v473 = vmul.f32 %v446, %v465
    %v474 = vmul.f32 %v449, %v466
    %v475 = vmul.f32 %v452, %v467
    %v476 = vmul.f32 %v455, %v468
    %v477 = vmul.f32 %v458, %v469
    %v478 = vmul.f32 %v461, %v470
    %v479 = vadd.f32 %v471, %v473
    %v480 = vadd.f32 %v472, %v474
    %v481 = vadd.f32 %v479, %v475
    %v482 = vadd.f32 %v480, %v476
    %v483 = vadd.f32 %v481, %v477
    %v484 = vadd.f32 %v482, %v478
    %v485 = vperm.slane %v66, 0
    %v487 = vsel %vm86, %v483, 0
    %v490 = vsel %vm86, %v484, 0
    %492 = vmatpush.msra.mxu0 0.0
    %493 = vmatpush.msra.mxu0 0.0
    %494 = vmatpush.msra.mxu0 0.0
    %495 = vmatpush.msra.mxu0 0.0
    %496 = vmatpush.msra.mxu0 0.0
    %497 = vmatpush.msra.mxu0 0.0
    %498 = vmatpush.msra.mxu0 0.0
    %499 = vmatpush.msra.mxu0 0.0
    %500 = vmatpush.msra.mxu0 0.0
    %501 = vmatpush.msra.mxu0 0.0
    %502 = vmatpush.msra.mxu0 0.0
    %503 = vmatpush.msra.mxu0 0.0
    %504 = vmatpush.msra.mxu0 %v44
    %505 = vmatpush.msra.mxu0 %v43
    %506 = vmatpush.msra.mxu0 %v42
    %507 = vmatpush.msra.mxu0 %v41
    %508 = vmatmul.f32.gmra.mxu0 %v487
    %v509 = vpop.f32.mrf.mxu0
    %v510 = vadd.f32 %v485, %v509
    %511 = vmatmul.f32.gmra.mxu0 %v490
    %v512 = vpop.f32.mrf.mxu0
    %v513 = vadd.f32 %v485, %v512
    %514 = vdwg.mxu0
    %v515 = vadd.f32 %v27, %v510
    %v516 = vadd.f32 %v28, %v513
    %v517 = vsel %vm86, %v515, 0.0
    %518 = vadd.xlane.f32.xlu0 %v517
    %v519 = vpop.xlane.xlu0 %518
    %v520 = vsel %vm86, %v516, 0.0
    %521 = vadd.xlane.f32.xlu0 %v520
    %v522 = vpop.xlane.xlu0 %521
    %v523 = vmul.f32 %v519, %v99
    %v524 = vmul.f32 %v522, %v99
    %v525 = vsub.f32 %v515, %v523
    %v526 = vsub.f32 %v516, %v524
    %v527 = vmul.f32 %v525, %v525
    %v528 = vmul.f32 %v526, %v526
    %v529 = vsel %vm86, %v527, 0.0
    %530 = vadd.xlane.f32.xlu0 %v529
    %v531 = vpop.xlane.xlu0 %530
    %v532 = vsel %vm86, %v528, 0.0
    %533 = vadd.xlane.f32.xlu0 %v532
    %v534 = vpop.xlane.xlu0 %533
    %v535 = vmul.f32 %v531, %v99
    %v536 = vmul.f32 %v534, %v99
    %v537 = vadd.f32 %v535, 1e-05
    %v538 = vadd.f32 %v536, 1e-05
    %v539 = vrsqrt.pop %v537
    %v540 = vmul.f32 %v539, %v537
    %v541 = vmul.f32 %v540, %v539
    %v542 = vmul.f32 0.5, %v541
    %v543 = vsub.f32 1.5, %v542
    %v544 = vmul.f32 %v539, %v543
    %vm545 = vweird.f32 %v537
    %vm546 = vweird.f32 %v539
    %vm547 = vmor %vm545, %vm546
    %v548 = vsel %vm547, %v539, %v544
    %v549 = vrsqrt.pop %v538
    %v550 = vmul.f32 %v549, %v538
    %v551 = vmul.f32 %v550, %v549
    %v552 = vmul.f32 0.5, %v551
    %v553 = vsub.f32 1.5, %v552
    %v554 = vmul.f32 %v549, %v553
    %vm555 = vweird.f32 %v538
    %vm556 = vweird.f32 %v549
    %vm557 = vmor %vm555, %vm556
    %v558 = vsel %vm557, %v549, %v554
    %v559 = vmul.f32 %v525, %v548
    %v560 = vmul.f32 %v526, %v558
    %v561 = vperm.slane %v67, 0
    %v562 = vmul.f32 %v559, %v561
    %v563 = vmul.f32 %v560, %v561
    %v564 = vperm.slane %v68, 0
    %v565 = vadd.f32 %v562, %v564
    %v566 = vadd.f32 %v563, %v564
    %v567 = vld [vmem:[%s2] sm:$0xff]
    %v568 = vld [vmem:[%s2 + $0x8] sm:$0xff]
    %v569 = vld [vmem:[%s2 + $0x10] sm:$0xff]
    %v570 = vld [vmem:[%s2 + $0x18] sm:$0xff]
    %v571 = vld [vmem:[%s3] sm:$0x1]
    %v573 = vperm.slane %v571, 0
    %v576 = vsel %vm86, %v565, 0
    %v579 = vsel %vm86, %v566, 0
    %581 = vmatpush.msra.mxu0 0.0
    %582 = vmatpush.msra.mxu0 0.0
    %583 = vmatpush.msra.mxu0 0.0
    %584 = vmatpush.msra.mxu0 0.0
    %585 = vmatpush.msra.mxu0 0.0
    %586 = vmatpush.msra.mxu0 0.0
    %587 = vmatpush.msra.mxu0 0.0
    %588 = vmatpush.msra.mxu0 0.0
    %589 = vmatpush.msra.mxu0 0.0
    %590 = vmatpush.msra.mxu0 0.0
    %591 = vmatpush.msra.mxu0 0.0
    %592 = vmatpush.msra.mxu0 0.0
    %593 = vmatpush.msra.mxu0 %v570
    %594 = vmatpush.msra.mxu0 %v569
    %595 = vmatpush.msra.mxu0 %v568
    %596 = vmatpush.msra.mxu0 %v567
    %597 = vmatmul.f32.gmra.mxu0 %v576
    %v598 = vpop.f32.mrf.mxu0
    %v599 = vadd.f32 %v573, %v598
    %600 = vmatmul.f32.gmra.mxu0 %v579
    %v601 = vpop.f32.mrf.mxu0
    %v602 = vadd.f32 %v573, %v601
    %603 = vdwg.mxu0
    %v604 = vmul.f32 %v599, 0.5
    %v605 = vmul.f32 %v602, 0.5
    %v606 = vrcp.pop 1.4142135
    %v607 = vmul.f32 1.4142135, %v606
    %v608 = vsub.f32 1.0, %v607
    %v609 = vmul.f32 %v606, %v608
    %v610 = vadd.f32 %v606, %v609
    %vm611 = vweird.f32 %v606
    %v612 = vsel %vm611, %v606, %v610
    %v613 = vmul.f32 %v599, %v612
    %v614 = vmul.f32 %v602, %v612
    %v615 = vmul.f32 %v613, %v613
    %v616 = vmin.f32 16.0, %v615
    %v617 = vmul.f32 %v616, 2.1237322e-06
    %v618 = vadd.f32 %v617, 0.00028619796
    %v619 = vmul.f32 %v616, %v618
    %v620 = vadd.f32 %v619, 0.0036580483
    %v621 = vmul.f32 %v616, %v620
    %v622 = vadd.f32 %v621, 0.05243302
    %v623 = vmul.f32 %v616, %v622
    %v624 = vadd.f32 %v623, 0.18741608
    %v625 = vmul.f32 %v616, %v624
    %v626 = vadd.f32 %v625, 1.1283791
    %v627 = vmul.f32 %v613, %v626
    %v628 = vmul.f32 %v616, 3.8918573e-05
    %v629 = vadd.f32 %v628, 0.001143296
    %v630 = vmul.f32 %v616, %v629
    %v631 = vadd.f32 %v630, 0.014752088
    %v632 = vmul.f32 %v616, %v631
    %v633 = vadd.f32 %v632, 0.112945676
    %v634 = vmul.f32 %v616, %v633
    %v635 = vadd.f32 %v634, 0.4994258
    %v636 = vmul.f32 %v616, %v635
    %v637 = vadd.f32 %v636, 1.0
    %v638 = vrcp.pop %v637
    %v639 = vmul.f32 %v637, %v638
    %v640 = vsub.f32 1.0, %v639
    %v641 = vmul.f32 %v638, %v640
    %v642 = vadd.f32 %v638, %v641
    %vm643 = vweird.f32 %v637
    %vm644 = vweird.f32 %v638
    %vm645 = vmor %vm643, %vm644
    %v646 = vsel %vm645, %v638, %v642
    %v647 = vand.u32 2147483647, %v637
    %vm648 = vcmp.eq.f32.partialorder %v647, 8.507059e+37
    %v649 = vand.u32 %v637, 2147483648
    %v650 = vor.u32 1.1754944e-38, %v649
    %v651 = vsel %vm648, %v650, %v646
    %v652 = vmul.f32 %v627, %v651
    %v653 = vmin.f32 %v652, 1.0
    %v654 = vmax.f32 %v653, -1.0
    %v655 = vmul.f32 %v614, %v614
    %v656 = vmin.f32 16.0, %v655
    %v657 = vmul.f32 %v656, 2.1237322e-06
    %v658 = vadd.f32 %v657, 0.00028619796
    %v659 = vmul.f32 %v656, %v658
    %v660 = vadd.f32 %v659, 0.0036580483
    %v661 = vmul.f32 %v656, %v660
    %v662 = vadd.f32 %v661, 0.05243302
    %v663 = vmul.f32 %v656, %v662
    %v664 = vadd.f32 %v663, 0.18741608
    %v665 = vmul.f32 %v656, %v664
    %v666 = vadd.f32 %v665, 1.1283791
    %v667 = vmul.f32 %v614, %v666
    %v668 = vmul.f32 %v656, 3.8918573e-05
    %v669 = vadd.f32 %v668, 0.001143296
    %v670 = vmul.f32 %v656, %v669
    %v671 = vadd.f32 %v670, 0.014752088
    %v672 = vmul.f32 %v656, %v671
    %v673 = vadd.f32 %v672, 0.112945676
    %v674 = vmul.f32 %v656, %v673
    %v675 = vadd.f32 %v674, 0.4994258
    %v676 = vmul.f32 %v656, %v675
    %v677 = vadd.f32 %v676, 1.0
    %v678 = vrcp.pop %v677
    %v679 = vmul.f32 %v677, %v678
    %v680 = vsub.f32 1.0, %v679
    %v681 = vmul.f32 %v678, %v680
    %v682 = vadd.f32 %v678, %v681
    %vm683 = vweird.f32 %v677
    %vm684 = vweird.f32 %v678
    %vm685 = vmor %vm683, %vm684
    %v686 = vsel %vm685, %v678, %v682
    %v687 = vand.u32 2147483647, %v677
    %vm688 = vcmp.eq.f32.partialorder %v687, 8.507059e+37
    %v689 = vand.u32 %v677, 2147483648
    %v690 = vor.u32 1.1754944e-38, %v689
    %v691 = vsel %vm688, %v690, %v686
    %v692 = vmul.f32 %v667, %v691
    %v693 = vmin.f32 %v692, 1.0
    %v694 = vmax.f32 %v693, -1.0
    %v695 = vadd.f32 %v654, 1.0
    %v696 = vadd.f32 %v694, 1.0
    %v697 = vmul.f32 %v604, %v695
    %v698 = vmul.f32 %v605, %v696
    %v699 = vperm.slane %v69, 0
    %700 = vmatpush.msra.mxu0 %v60
    %701 = vmatpush.msra.mxu0 %v59
    %702 = vmatpush.msra.mxu0 %v58
    %703 = vmatpush.msra.mxu0 %v57
    %704 = vmatpush.msra.mxu0 %v56
    %705 = vmatpush.msra.mxu0 %v55
    %706 = vmatpush.msra.mxu0 %v54
    %707 = vmatpush.msra.mxu0 %v53
    %708 = vmatpush.msra.mxu0 %v52
    %709 = vmatpush.msra.mxu0 %v51
    %710 = vmatpush.msra.mxu0 %v50
    %711 = vmatpush.msra.mxu0 %v49
    %712 = vmatpush.msra.mxu0 %v48
    %713 = vmatpush.msra.mxu0 %v47
    %714 = vmatpush.msra.mxu0 %v46
    %715 = vmatpush.msra.mxu0 %v45
    %716 = vmatmul.f32.gmra.mxu0 %v697
    %v717 = vpop.f32.mrf.mxu0
    %v718 = vadd.f32 %v699, %v717
    %719 = vmatmul.f32.gmra.mxu0 %v698
    %v720 = vpop.f32.mrf.mxu0
    %v721 = vadd.f32 %v699, %v720
    %722 = vdwg.mxu0
    %v723 = vadd.f32 %v515, %v718
    %v724 = vadd.f32 %v516, %v721
    %725 = vst.msk [vmem:[#allocation2] sm:$0xff] %vm86, %v723
    %726 = vst.msk [vmem:[#allocation2 + $0x8] sm:$0xff] %vm86, %v724
    // Predicated region
    $region30: #{tpu_custom_call.1} parent=1 // pred_check
      _
    $region31: #{tpu_custom_call.1} parent=1 // pred_check_branch
      %728 = sbr.rel (0) target = $region33
    $region32: #{tpu_custom_call.1} parent=1 // pred_region
      %730 = vsyncadd [#allocation3], 0
      %s731 = sshll.u32 [#allocation2], 4
      %s732 = int_to_ptr.vmem [resolvable:$true] %s731
      %s733 = sshll.u32 %s7, 4
      %s734 = int_to_ptr.hbm [resolvable:$true] %s733
      %739 = dma.vmem_to_hbm [thread:$0]  %s732, 256, %s734, [#allocation3], 128, 128, 8
    $region33: #{tpu_custom_call.1} parent=1 // pred_fallthru
      _
    // Predicated region
    $region34: #{tpu_custom_call.1} parent=1 // pred_check
      _
    $region35: #{tpu_custom_call.1} parent=1 // pred_check_branch
      %741 = sbr.rel (0) target = $region37
    $region36: #{tpu_custom_call.1} parent=1 // pred_region
      %743 = dma.done [#allocation3], 256
    $region37: #{tpu_custom_call.1} parent=1 // pred_fallthru
      _
    %744 = vsyncpa [#allocation3], 1

</llo_original>
